<compile_context>
chip_gen: v7x
topology: tpu7x:2x2x1
jax: 0.10.0
libtpu: 0.0.40
codegen_flags: <defaults>
</compile_context>

<pallas_src>
import jax
import jax.numpy as jnp
from jax.experimental import pallas as pl
from jax.experimental.pallas import tpu as pltpu

NC = 2          # input feature dim (matches `nc = 2` in the PyTorch script)
HIDDEN = 64
H2 = 16
OUT = 1
LEAKY_SLOPE = 0.01  # PyTorch nn.LeakyReLU() default

# Fixed tile buckets (multiples of 128 lanes). Largest default bucket chosen so the
# live (64, TB) intermediates + double-buffered I/O tiles fit comfortably in v7x's
# 64 MiB VMEM; v5e/v6e (128 MiB) users may pass block_batch=32768.
_TB_BUCKETS = (128, 512, 2048, 8192, 32768)
_DEFAULT_BLOCK_BATCH = 8192
_VMEM_LIMIT_BYTES = 48 * 1024 * 1024


def _cdiv(a, b):
    return (a + b - 1) // b


def _round_up(n, m):
    return _cdiv(n, m) * m


def _pick_tb(batch, block_batch):
    """Pick a batch tile from the fixed bucket set.

    Rule: largest bucket <= max(ceil(B/2), 128), capped by block_batch.  This keeps
    pad waste below one tile, avoids per-batch-size recompiles, and yields >= 2 grid
    steps (so both v7x TensorCores get work) whenever B > 128.
    """
    cap = max(_TB_BUCKETS[0], min(int(block_batch), _TB_BUCKETS[-1]))
    target = min(cap, max(_cdiv(batch, 2), _TB_BUCKETS[0]))
    tb = _TB_BUCKETS[0]
    for b in _TB_BUCKETS:
        if b <= target:
            tb = b
    return tb


def _discriminator_kernel(x_ref,   # (NC, TB)   f32   input tile, batch on lanes
                          ps_ref,  # (64, 8)    f32   packed small params
                          wm_ref,  # (144, 64)  bf16  packed w2|w3|w4
                          o_ref):  # (1, TB)    f32   output tile (lane-dense)
    x = x_ref[...]                              # (2, TB)

    # Packed small params: cols = [w1[:,0], w1[:,1], b1, b2, b3, b4(pad), w5(pad), b5(pad)]
    w1c0 = ps_ref[:, 0:1]                       # (64, 1)
    w1c1 = ps_ref[:, 1:2]                       # (64, 1)
    b1 = ps_ref[:, 2:3]                         # (64, 1)
    b2 = ps_ref[:, 3:4]                         # (64, 1)
    b3 = ps_ref[:, 4:5]                         # (64, 1)
    b4 = ps_ref[0:16, 5:6]                      # (16, 1)
    w5 = ps_ref[0:16, 6:7]                      # (16, 1)
    b5 = ps_ref[0:1, 7:8]                       # (1, 1)

    # ---- Layer 1 (Linear(2,64)) on the VPU: K=2 would waste a full MXU pass ----
    h = w1c0 * x[0:1, :] + w1c1 * x[1:2, :] + b1            # (64, TB) f32
    h = jnp.maximum(h, 0.0).astype(jnp.bfloat16)            # bf16 intermediate

    # ---- Layers 2-4 on the MXU: bf16 operands, f32 accumulation ----
    w2 = wm_ref[0:64, :]                        # (64, 64) bf16
    w3 = wm_ref[64:128, :]                      # (64, 64) bf16
    w4 = wm_ref[128:144, :]                     # (16, 64) bf16

    h = jnp.dot(w2, h, preferred_element_type=jnp.float32) + b2
    h = jnp.maximum(h, 0.0).astype(jnp.bfloat16)            # (64, TB) bf16

    h = jnp.dot(w3, h, preferred_element_type=jnp.float32) + b3
    h = jnp.maximum(h, 0.0).astype(jnp.bfloat16)            # (64, TB) bf16

    h = jnp.dot(w4, h, preferred_element_type=jnp.float32) + b4
    h = jnp.maximum(h, 0.0)                                  # (16, TB) f32

    # ---- Layer 5 (Linear(16,1)) on VPU/XLU: weighted cross-sublane reduce ----
    y = jnp.sum(w5 * h, axis=0, keepdims=True) + b5          # (1, TB)
    y = jnp.where(y >= 0.0, y, LEAKY_SLOPE * y)              # LeakyReLU(0.01)

    o_ref[...] = y.astype(o_ref.dtype)


def _pack_params(params):
    """Collapse the 10 parameter tensors into 2 kernel operands."""
    ps = jnp.zeros((HIDDEN, 8), jnp.float32)
    w1 = params["w1"].astype(jnp.float32)                    # (64, 2)
    ps = ps.at[:, 0].set(w1[:, 0])
    ps = ps.at[:, 1].set(w1[:, 1])
    ps = ps.at[:, 2].set(params["b1"].astype(jnp.float32))
    ps = ps.at[:, 3].set(params["b2"].astype(jnp.float32))
    ps = ps.at[:, 4].set(params["b3"].astype(jnp.float32))
    ps = ps.at[:H2, 5].set(params["b4"].astype(jnp.float32))
    ps = ps.at[:H2, 6].set(params["w5"].reshape(H2).astype(jnp.float32))
    ps = ps.at[0, 7].set(params["b5"].astype(jnp.float32)[0])

    wm = jnp.concatenate(
        [params["w2"], params["w3"], params["w4"]], axis=0
    ).astype(jnp.bfloat16)                                   # (144, 64)
    return ps, wm


def discriminator_forward(x, params, *, block_batch=_DEFAULT_BLOCK_BATCH):
    """x: (B, NC) float32; params: dict from init_params. Returns (B, 1) float32."""
    B = x.shape[0]
    tb = _pick_tb(max(B, 1), block_batch)
    B_pad = _round_up(max(B, 1), tb)
    num_tiles = B_pad // tb

    # Pad batch and transpose so the batch sits on the lane (last) axis.
    # (Input is only 8 B/sample, so this extra HBM round-trip is negligible.)
    x_pad = jnp.pad(x.astype(jnp.float32), ((0, B_pad - B), (0, 0)))
    xt = x_pad.T                                             # (NC, B_pad)

    ps, wm = _pack_params(params)

    in_specs = [
        pl.BlockSpec((NC, tb), lambda i: (0, i)),            # streamed input tile
        pl.BlockSpec(ps.shape, lambda i: (0, 0)),            # resident small params
        pl.BlockSpec(wm.shape, lambda i: (0, 0)),            # resident bf16 weights
    ]

    out = pl.pallas_call(
        _discriminator_kernel,
        out_shape=jax.ShapeDtypeStruct((1, B_pad), jnp.float32),
        grid=(num_tiles,),
        in_specs=in_specs,
        out_specs=pl.BlockSpec((1, tb), lambda i: (0, i)),
        compiler_params=pltpu.CompilerParams(
            dimension_semantics=("parallel",),
            vmem_limit_bytes=_VMEM_LIMIT_BYTES),
    )(xt, ps, wm)

    return out[0, :B].reshape(B, OUT)


def init_params(key):
    """Deterministic init mimicking PyTorch's default Linear init
    (uniform(-1/sqrt(fan_in), 1/sqrt(fan_in)) for weight and bias).
    Weights stored PyTorch-style as (out_features, in_features)."""
    dims = [(NC, HIDDEN), (HIDDEN, HIDDEN), (HIDDEN, HIDDEN), (HIDDEN, H2), (H2, OUT)]
    params = {}
    keys = jax.random.split(key, 2 * len(dims))
    for i, (fan_in, fan_out) in enumerate(dims):
        bound = float(fan_in) ** -0.5
        params[f"w{i+1}"] = jax.random.uniform(
            keys[2 * i], (fan_out, fan_in), jnp.float32, -bound, bound)
        params[f"b{i+1}"] = jax.random.uniform(
            keys[2 * i + 1], (fan_out,), jnp.float32, -bound, bound)
    return params


def _reference_forward(x, params):
    """Pure-JAX reference mirroring the kernel's numerics (bf16 operands for the
    three 64-wide matmuls, f32 accumulation), standard (batch, feature) layout."""
    def mm_bf16(h, w, b):
        hf = h.astype(jnp.bfloat16).astype(jnp.float32)
        wf = w.astype(jnp.bfloat16).astype(jnp.float32)
        return hf @ wf.T + b

    h = jnp.maximum(x @ params["w1"].T + params["b1"], 0.0)
    h = jnp.maximum(mm_bf16(h, params["w2"], params["b2"]), 0.0)
    h = jnp.maximum(mm_bf16(h, params["w3"], params["b3"]), 0.0)
    h = jnp.maximum(mm_bf16(h, params["w4"], params["b4"]), 0.0)
    y = h @ params["w5"].T + params["b5"]
    return jnp.where(y >= 0.0, y, LEAKY_SLOPE * y)


if __name__ == "__main__":
    key = jax.random.PRNGKey(0)
    k_params, k_x1, k_x2 = jax.random.split(key, 3)

    params = init_params(k_params)

    # Small batch (single 128-lane tile, padding exercised).
    batch = 8
    x = jax.random.normal(k_x1, (batch, NC), dtype=jnp.float32)
    out = jax.block_until_ready(discriminator_forward(x, params))
    ref = _reference_forward(x, params)
    assert out.shape == (batch, OUT), out.shape
    assert jnp.allclose(out, ref, atol=1e-3, rtol=1e-3), (out, ref)

    # Non-multiple batch exercising padding + a multi-step "parallel" grid
    # (bucket rule picks tb=128 -> 3 grid steps).
    batch2 = 300
    x2 = jax.random.normal(k_x2, (batch2, NC), dtype=jnp.float32)
    out2 = jax.block_until_ready(discriminator_forward(x2, params))
    ref2 = _reference_forward(x2, params)
    assert out2.shape == (batch2, OUT), out2.shape
    assert jnp.allclose(out2, ref2, atol=1e-3, rtol=1e-3)

    print("KERNEL_OK")
</pallas_src>

<mosaic_0001>
module attributes {stable_mosaic.version = 11 : i64} {
  func.func @_discriminator_kernel(%arg0: i32, %arg1: memref<2x128xf32, #tpu.memory_space<vmem>>, %arg2: memref<64x8xf32, #tpu.memory_space<vmem>>, %arg3: memref<144x64xbf16, #tpu.memory_space<vmem>>, %arg4: memref<1x128xf32, #tpu.memory_space<vmem>>) attributes {dimension_semantics = [#tpu.dimension_semantics<parallel>], iteration_bounds = array<i64: 1>, scalar_prefetch = 0 : i64, scratch_operands = 0 : i64, tpu.core_type = #tpu.core_type<tc>, window_params = [{transform_indices = @transform_0, window_bounds = array<i64: 2, 128>}, {pipeline_mode = #tpu.pipeline_mode<synchronous>, transform_indices = @transform_1, window_bounds = array<i64: 64, 8>}, {pipeline_mode = #tpu.pipeline_mode<synchronous>, transform_indices = @transform_2, window_bounds = array<i64: 144, 64>}, {transform_indices = @transform_3, window_bounds = array<i64: 1, 128>}]} {
    %c0 = arith.constant 0 : index
    %c0_0 = arith.constant 0 : index
    %0 = vector.load %arg1[%c0, %c0_0] : memref<2x128xf32, #tpu.memory_space<vmem>>, vector<2x128xf32>
    %c0_1 = arith.constant 0 : index
    %c0_2 = arith.constant 0 : index
    %1 = vector.load %arg2[%c0_1, %c0_2] : memref<64x8xf32, #tpu.memory_space<vmem>>, vector<64x1xf32>
    %c0_3 = arith.constant 0 : index
    %c1 = arith.constant 1 : index
    %2 = vector.load %arg2[%c0_3, %c1] : memref<64x8xf32, #tpu.memory_space<vmem>>, vector<64x1xf32>
    %c0_4 = arith.constant 0 : index
    %c2 = arith.constant 2 : index
    %3 = vector.load %arg2[%c0_4, %c2] : memref<64x8xf32, #tpu.memory_space<vmem>>, vector<64x1xf32>
    %c0_5 = arith.constant 0 : index
    %c3 = arith.constant 3 : index
    %4 = vector.load %arg2[%c0_5, %c3] : memref<64x8xf32, #tpu.memory_space<vmem>>, vector<64x1xf32>
    %c0_6 = arith.constant 0 : index
    %c4 = arith.constant 4 : index
    %5 = vector.load %arg2[%c0_6, %c4] : memref<64x8xf32, #tpu.memory_space<vmem>>, vector<64x1xf32>
    %c0_7 = arith.constant 0 : index
    %c5 = arith.constant 5 : index
    %6 = vector.load %arg2[%c0_7, %c5] : memref<64x8xf32, #tpu.memory_space<vmem>>, vector<16x1xf32>
    %c0_8 = arith.constant 0 : index
    %c6 = arith.constant 6 : index
    %7 = vector.load %arg2[%c0_8, %c6] : memref<64x8xf32, #tpu.memory_space<vmem>>, vector<16x1xf32>
    %c0_9 = arith.constant 0 : index
    %c7 = arith.constant 7 : index
    %8 = vector.load %arg2[%c0_9, %c7] : memref<64x8xf32, #tpu.memory_space<vmem>>, vector<1x1xf32>
    %9 = vector.extract_strided_slice %0 {offsets = [0, 0], sizes = [1, 128], strides = [1, 1]} : vector<2x128xf32> to vector<1x128xf32>
    %10 = vector.broadcast %1 : vector<64x1xf32> to vector<64x128xf32>
    %11 = vector.broadcast %9 : vector<1x128xf32> to vector<64x128xf32>
    %12 = arith.mulf %10, %11 : vector<64x128xf32>
    %13 = vector.extract_strided_slice %0 {offsets = [1, 0], sizes = [1, 128], strides = [1, 1]} : vector<2x128xf32> to vector<1x128xf32>
    %14 = vector.broadcast %2 : vector<64x1xf32> to vector<64x128xf32>
    %15 = vector.broadcast %13 : vector<1x128xf32> to vector<64x128xf32>
    %16 = arith.mulf %14, %15 : vector<64x128xf32>
    %17 = arith.addf %12, %16 : vector<64x128xf32>
    %18 = vector.broadcast %3 : vector<64x1xf32> to vector<64x128xf32>
    %19 = arith.addf %17, %18 : vector<64x128xf32>
    %cst = arith.constant 0.000000e+00 : f32
    %20 = vector.broadcast %cst : f32 to vector<64x128xf32>
    %21 = arith.maximumf %19, %20 : vector<64x128xf32>
    %22 = arith.truncf %21 : vector<64x128xf32> to vector<64x128xbf16>
    %c0_10 = arith.constant 0 : index
    %c0_11 = arith.constant 0 : index
    %23 = vector.load %arg3[%c0_10, %c0_11] : memref<144x64xbf16, #tpu.memory_space<vmem>>, vector<64x64xbf16>
    %c64 = arith.constant 64 : index
    %c0_12 = arith.constant 0 : index
    %24 = vector.load %arg3[%c64, %c0_12] : memref<144x64xbf16, #tpu.memory_space<vmem>>, vector<64x64xbf16>
    %c128 = arith.constant 128 : index
    %c0_13 = arith.constant 0 : index
    %25 = vector.load %arg3[%c128, %c0_13] : memref<144x64xbf16, #tpu.memory_space<vmem>>, vector<16x64xbf16>
    %cst_14 = arith.constant dense<0.000000e+00> : vector<64x128xf32>
    %26 = tpu.matmul %23, %22, %cst_14 {dimension_numbers = #tpu.dot_dimension_numbers<[1], [0], [0], [1], [0, 0, 1, 1], [], []>} : vector<64x64xbf16>, vector<64x128xbf16>, vector<64x128xf32> -> vector<64x128xf32>
    %27 = vector.broadcast %4 : vector<64x1xf32> to vector<64x128xf32>
    %28 = arith.addf %26, %27 : vector<64x128xf32>
    %cst_15 = arith.constant 0.000000e+00 : f32
    %29 = vector.broadcast %cst_15 : f32 to vector<64x128xf32>
    %30 = arith.maximumf %28, %29 : vector<64x128xf32>
    %31 = arith.truncf %30 : vector<64x128xf32> to vector<64x128xbf16>
    %cst_16 = arith.constant dense<0.000000e+00> : vector<64x128xf32>
    %32 = tpu.matmul %24, %31, %cst_16 {dimension_numbers = #tpu.dot_dimension_numbers<[1], [0], [0], [1], [0, 0, 1, 1], [], []>} : vector<64x64xbf16>, vector<64x128xbf16>, vector<64x128xf32> -> vector<64x128xf32>
    %33 = vector.broadcast %5 : vector<64x1xf32> to vector<64x128xf32>
    %34 = arith.addf %32, %33 : vector<64x128xf32>
    %cst_17 = arith.constant 0.000000e+00 : f32
    %35 = vector.broadcast %cst_17 : f32 to vector<64x128xf32>
    %36 = arith.maximumf %34, %35 : vector<64x128xf32>
    %37 = arith.truncf %36 : vector<64x128xf32> to vector<64x128xbf16>
    %cst_18 = arith.constant dense<0.000000e+00> : vector<16x128xf32>
    %38 = tpu.matmul %25, %37, %cst_18 {dimension_numbers = #tpu.dot_dimension_numbers<[1], [0], [0], [1], [0, 0, 1, 1], [], []>} : vector<16x64xbf16>, vector<64x128xbf16>, vector<16x128xf32> -> vector<16x128xf32>
    %39 = vector.broadcast %6 : vector<16x1xf32> to vector<16x128xf32>
    %40 = arith.addf %38, %39 : vector<16x128xf32>
    %cst_19 = arith.constant 0.000000e+00 : f32
    %41 = vector.broadcast %cst_19 : f32 to vector<16x128xf32>
    %42 = arith.maximumf %40, %41 : vector<16x128xf32>
    %43 = vector.broadcast %7 : vector<16x1xf32> to vector<16x128xf32>
    %44 = arith.mulf %43, %42 : vector<16x128xf32>
    %cst_20 = arith.constant dense<0.000000e+00> : vector<128xf32>
    %45 = vector.multi_reduction <add>, %44, %cst_20 [0] : vector<16x128xf32> to vector<128xf32>
    %46 = vector.shape_cast %45 : vector<128xf32> to vector<1x128xf32>
    %47 = vector.broadcast %8 : vector<1x1xf32> to vector<1x128xf32>
    %48 = arith.addf %46, %47 : vector<1x128xf32>
    %cst_21 = arith.constant 0.000000e+00 : f32
    %49 = vector.broadcast %cst_21 : f32 to vector<1x128xf32>
    %50 = arith.cmpf oge, %48, %49 : vector<1x128xf32>
    %cst_22 = arith.constant 0.00999999977 : f32
    %51 = vector.broadcast %cst_22 : f32 to vector<1x128xf32>
    %52 = arith.mulf %51, %48 : vector<1x128xf32>
    %53 = arith.select %50, %48, %52 : vector<1x128xi1>, vector<1x128xf32>
    %c0_23 = arith.constant 0 : index
    %c0_24 = arith.constant 0 : index
    %54 = vector.load %arg4[%c0_23, %c0_24] : memref<1x128xf32, #tpu.memory_space<vmem>>, vector<1x128xf32>
    tpu.vector_store %arg4[%c0_23, %c0_24], %53 {strides = array<i32>} : memref<1x128xf32, #tpu.memory_space<vmem>>, vector<1x128xf32>,
    return
  }
  func.func @transform_0(%arg0: i32) -> (i32, i32) {
    %c0_i32 = arith.constant 0 : i32
    %c0_i32_0 = arith.constant 0 : i32
    return %c0_i32, %arg0 : i32, i32
  }
  func.func @transform_1(%arg0: i32) -> (i32, i32) {
    %c0_i32 = arith.constant 0 : i32
    %c0_i32_0 = arith.constant 0 : i32
    %c0_i32_1 = arith.constant 0 : i32
    return %c0_i32, %c0_i32_0 : i32, i32
  }
  func.func @transform_2(%arg0: i32) -> (i32, i32) {
    %c0_i32 = arith.constant 0 : i32
    %c0_i32_0 = arith.constant 0 : i32
    %c0_i32_1 = arith.constant 0 : i32
    return %c0_i32, %c0_i32_0 : i32, i32
  }
  func.func @transform_3(%arg0: i32) -> (i32, i32) {
    %c0_i32 = arith.constant 0 : i32
    %c0_i32_0 = arith.constant 0 : i32
    return %c0_i32, %arg0 : i32, i32
  }
}

</mosaic_0001>

<llo_original>
// kernel: tpu_custom_call.1
$region0: #{tpu_custom_call.1}
  #allocation0 [shape = 'u32[]', space=smem, size = 0x4, offset = 0x4, fixed_abs, tag = 'smem constant byte address 0x4 - core index']
  #allocation1 [shape = 'u32[144,128]{1,0:T(1,128)}', space=vmem, size = 0x12000, scoped, tag = 'internal scratch']
  %s0 = inlined_call_operand.vmem [shape: f32[2,128], index: 0, kind: input, shape index: {}]
  %s1 = inlined_call_operand.vmem [shape: f32[64,8], index: 1, kind: input, shape index: {}]
  %s2 = inlined_call_operand.vmem [shape: bf16[144,64], index: 2, kind: input, shape index: {}]
  %s3 = inlined_call_operand.hbm [shape: f32[1,128], index: 3, kind: output, shape index: {}]
  %s4 = sld [smem:[#allocation0]]
  $region22: #{tpu_custom_call.1} parent=0
    _
  %s6 = ssub.s32 1, %s4
  %s7 = scalar_select 0, %s6, %s4
  $region1: #{tpu_custom_call.1} parent=0
    #allocation2 [shape = 'u8[512]{0}', space=vmem, size = 0x400, scoped, tag = 'output window, operand 0, single buffered']
    #allocation3 [shape = 's32[1]{0}', space=sflag, size = 0x4, scoped, tag = 'scoped memory for tpu_custom_call.1']
    %8 = vsyncpa [#allocation3], 0
    // Predicated region
    $region2: #{tpu_custom_call.1} parent=1 // pred_check
      _
    $region3: #{tpu_custom_call.1} parent=1 // pred_check_branch
      %10 = sbr.rel (0) target = $region5
    $region4: #{tpu_custom_call.1} parent=1 // pred_region
      _
    $region5: #{tpu_custom_call.1} parent=1 // pred_fallthru
      _
    // Predicated region
    $region6: #{tpu_custom_call.1} parent=1 // pred_check
      _
    $region7: #{tpu_custom_call.1} parent=1 // pred_check_branch
      %12 = sbr.rel (0) target = $region9
    $region8: #{tpu_custom_call.1} parent=1 // pred_region
      _
    $region9: #{tpu_custom_call.1} parent=1 // pred_fallthru
      _
    // Predicated region
    $region10: #{tpu_custom_call.1} parent=1 // pred_check
      _
    $region11: #{tpu_custom_call.1} parent=1 // pred_check_branch
      %14 = sbr.rel (0) target = $region13
    $region12: #{tpu_custom_call.1} parent=1 // pred_region
      _
    $region13: #{tpu_custom_call.1} parent=1 // pred_fallthru
      _
    %v16 = vld [vmem:[%s0] sm:$0x3]
    %v17 = vld [vmem:[%s1] sm:$0xff]
    %v18 = vld [vmem:[%s1 + $0x8] sm:$0xff]
    %v19 = vld [vmem:[%s1 + $0x10] sm:$0xff]
    %v20 = vld [vmem:[%s1 + $0x18] sm:$0xff]
    %v21 = vld [vmem:[%s1 + $0x20] sm:$0xff]
    %v22 = vld [vmem:[%s1 + $0x28] sm:$0xff]
    %v23 = vld [vmem:[%s1 + $0x30] sm:$0xff]
    %v24 = vld [vmem:[%s1 + $0x38] sm:$0xff]
    %v25 = vld [vmem:[%s1] sm:$0x1]
    %27 = vset.pattern.permute.xlu0 0
    %28 = vperm.xlu0 %27, %v17
    %v29 = vpop.permute.xlu0 %28
    %32 = vset.pattern.permute.xlu0 0
    %33 = vperm.xlu0 %32, %v18
    %v34 = vpop.permute.xlu0 %33
    %37 = vset.pattern.permute.xlu0 0
    %38 = vperm.xlu0 %37, %v19
    %v39 = vpop.permute.xlu0 %38
    %42 = vset.pattern.permute.xlu0 0
    %43 = vperm.xlu0 %42, %v20
    %v44 = vpop.permute.xlu0 %43
    %47 = vset.pattern.permute.xlu0 0
    %48 = vperm.xlu0 %47, %v21
    %v49 = vpop.permute.xlu0 %48
    %52 = vset.pattern.permute.xlu0 0
    %53 = vperm.xlu0 %52, %v22
    %v54 = vpop.permute.xlu0 %53
    %57 = vset.pattern.permute.xlu0 0
    %58 = vperm.xlu0 %57, %v23
    %v59 = vpop.permute.xlu0 %58
    %62 = vset.pattern.permute.xlu0 0
    %63 = vperm.xlu0 %62, %v24
    %v64 = vpop.permute.xlu0 %63
    %v66 = vlaneseq
    %v67 = vshrl.u32 %v66, 7
    %v68 = vsub.s32 0, %v67
    %v69 = vrot.slane %v16, %v68
    %v70 = vmul.f32 %v29, %v69
    %v71 = vmul.f32 %v34, %v69
    %v72 = vmul.f32 %v39, %v69
    %v73 = vmul.f32 %v44, %v69
    %v74 = vmul.f32 %v49, %v69
    %v75 = vmul.f32 %v54, %v69
    %v76 = vmul.f32 %v59, %v69
    %v77 = vmul.f32 %v64, %v69
    %78 = vset.pattern.permute.xlu0 1
    %79 = vperm.xlu0 %78, %v17
    %v80 = vpop.permute.xlu0 %79
    %82 = vset.pattern.permute.xlu0 1
    %83 = vperm.xlu0 %82, %v18
    %v84 = vpop.permute.xlu0 %83
    %86 = vset.pattern.permute.xlu0 1
    %87 = vperm.xlu0 %86, %v19
    %v88 = vpop.permute.xlu0 %87
    %90 = vset.pattern.permute.xlu0 1
    %91 = vperm.xlu0 %90, %v20
    %v92 = vpop.permute.xlu0 %91
    %94 = vset.pattern.permute.xlu0 1
    %95 = vperm.xlu0 %94, %v21
    %v96 = vpop.permute.xlu0 %95
    %98 = vset.pattern.permute.xlu0 1
    %99 = vperm.xlu0 %98, %v22
    %v100 = vpop.permute.xlu0 %99
    %102 = vset.pattern.permute.xlu0 1
    %103 = vperm.xlu0 %102, %v23
    %v104 = vpop.permute.xlu0 %103
    %106 = vset.pattern.permute.xlu0 1
    %107 = vperm.xlu0 %106, %v24
    %v108 = vpop.permute.xlu0 %107
    %v110 = vlaneseq
    %v111 = vshrl.u32 %v110, 7
    %v112 = vsub.s32 1, %v111
    %v113 = vrot.slane %v16, %v112
    %v114 = vmul.f32 %v80, %v113
    %v115 = vmul.f32 %v84, %v113
    %v116 = vmul.f32 %v88, %v113
    %v117 = vmul.f32 %v92, %v113
    %v118 = vmul.f32 %v96, %v113
    %v119 = vmul.f32 %v100, %v113
    %v120 = vmul.f32 %v104, %v113
    %v121 = vmul.f32 %v108, %v113
    %v122 = vadd.f32 %v70, %v114
    %v123 = vadd.f32 %v71, %v115
    %v124 = vadd.f32 %v72, %v116
    %v125 = vadd.f32 %v73, %v117
    %v126 = vadd.f32 %v74, %v118
    %v127 = vadd.f32 %v75, %v119
    %v128 = vadd.f32 %v76, %v120
    %v129 = vadd.f32 %v77, %v121
    %130 = vset.pattern.permute.xlu0 2
    %131 = vperm.xlu0 %130, %v17
    %v132 = vpop.permute.xlu0 %131
    %134 = vset.pattern.permute.xlu0 2
    %135 = vperm.xlu0 %134, %v18
    %v136 = vpop.permute.xlu0 %135
    %138 = vset.pattern.permute.xlu0 2
    %139 = vperm.xlu0 %138, %v19
    %v140 = vpop.permute.xlu0 %139
    %142 = vset.pattern.permute.xlu0 2
    %143 = vperm.xlu0 %142, %v20
    %v144 = vpop.permute.xlu0 %143
    %146 = vset.pattern.permute.xlu0 2
    %147 = vperm.xlu0 %146, %v21
    %v148 = vpop.permute.xlu0 %147
    %150 = vset.pattern.permute.xlu0 2
    %151 = vperm.xlu0 %150, %v22
    %v152 = vpop.permute.xlu0 %151
    %154 = vset.pattern.permute.xlu0 2
    %155 = vperm.xlu0 %154, %v23
    %v156 = vpop.permute.xlu0 %155
    %158 = vset.pattern.permute.xlu0 2
    %159 = vperm.xlu0 %158, %v24
    %v160 = vpop.permute.xlu0 %159
    %v162 = vadd.f32 %v122, %v132
    %v163 = vadd.f32 %v123, %v136
    %v164 = vadd.f32 %v124, %v140
    %v165 = vadd.f32 %v125, %v144
    %v166 = vadd.f32 %v126, %v148
    %v167 = vadd.f32 %v127, %v152
    %v168 = vadd.f32 %v128, %v156
    %v169 = vadd.f32 %v129, %v160
    %v170 = vmax.f32 %v162, 0.0
    %v171 = vmax.f32 %v163, 0.0
    %v172 = vmax.f32 %v164, 0.0
    %v173 = vmax.f32 %v165, 0.0
    %v174 = vmax.f32 %v166, 0.0
    %v175 = vmax.f32 %v167, 0.0
    %v176 = vmax.f32 %v168, 0.0
    %v177 = vmax.f32 %v169, 0.0
    %v178 = vpack.c.bf16 %v171, %v170
    %v179 = vpack.c.bf16 %v173, %v172
    %v180 = vpack.c.bf16 %v175, %v174
    %v181 = vpack.c.bf16 %v177, %v176
    %v182 = vld [vmem:[%s2] sm:$0xf]
    %v183 = vld [vmem:[%s2 + $0x4] sm:$0xf]
    %v184 = vld [vmem:[%s2 + $0x8] sm:$0xf]
    %v185 = vld [vmem:[%s2 + $0xc] sm:$0xf]
    %v186 = vld [vmem:[%s2 + $0x10] sm:$0xf]
    %v187 = vld [vmem:[%s2 + $0x14] sm:$0xf]
    %v188 = vld [vmem:[%s2 + $0x18] sm:$0xf]
    %v189 = vld [vmem:[%s2 + $0x1c] sm:$0xf]
    %v190 = vld [vmem:[%s2 + $0x20] sm:$0xf]
    %v191 = vld [vmem:[%s2 + $0x24] sm:$0xf]
    %v192 = vld [vmem:[%s2 + $0x28] sm:$0xf]
    %v193 = vld [vmem:[%s2 + $0x2c] sm:$0xf]
    %v194 = vld [vmem:[%s2 + $0x30] sm:$0xf]
    %v195 = vld [vmem:[%s2 + $0x34] sm:$0xf]
    %v196 = vld [vmem:[%s2 + $0x38] sm:$0xf]
    %v197 = vld [vmem:[%s2 + $0x3c] sm:$0xf]
    %v198 = vld [vmem:[%s2 + $0x40] sm:$0xf]
    %v199 = vld [vmem:[%s2 + $0x44] sm:$0xf]
    %200 = vset.pattern.permute.xlu0 3
    %201 = vperm.xlu0 %200, %v17
    %v202 = vpop.permute.xlu0 %201
    %204 = vset.pattern.permute.xlu0 3
    %205 = vperm.xlu0 %204, %v18
    %v206 = vpop.permute.xlu0 %205
    %208 = vset.pattern.permute.xlu0 3
    %209 = vperm.xlu0 %208, %v19
    %v210 = vpop.permute.xlu0 %209
    %212 = vset.pattern.permute.xlu0 3
    %213 = vperm.xlu0 %212, %v20
    %v214 = vpop.permute.xlu0 %213
    %216 = vset.pattern.permute.xlu0 3
    %217 = vperm.xlu0 %216, %v21
    %v218 = vpop.permute.xlu0 %217
    %220 = vset.pattern.permute.xlu0 3
    %221 = vperm.xlu0 %220, %v22
    %v222 = vpop.permute.xlu0 %221
    %224 = vset.pattern.permute.xlu0 3
    %225 = vperm.xlu0 %224, %v23
    %v226 = vpop.permute.xlu0 %225
    %228 = vset.pattern.permute.xlu0 3
    %229 = vperm.xlu0 %228, %v24
    %v230 = vpop.permute.xlu0 %229
    %v240 = vunpack.c.l.b16 %v182
    %v241 = vunpack.c.l.b16 %v183
    %v242 = vunpack.c.l.b16 %v184
    %v243 = vunpack.c.l.b16 %v185
    %v244 = vunpack.c.l.b16 %v186
    %v245 = vunpack.c.l.b16 %v187
    %v246 = vunpack.c.l.b16 %v188
    %v247 = vunpack.c.l.b16 %v189
    %v248 = vpack.c.b16 %v241, %v240
    %v249 = vpack.c.b16 %v243, %v242
    %v250 = vpack.c.b16 %v245, %v244
    %v251 = vpack.c.b16 %v247, %v246
    %vm252 = vcmask 523264
    %v254 = vsel %vm252, %v248, 0
    %v257 = vsel %vm252, %v249, 0
    %v260 = vsel %vm252, %v250, 0
    %v263 = vsel %vm252, %v251, 0
    %265 = vmatprep.subr.bf16.mxu0 0
    %266 = vmatpush1.bf16.msra.mxu0 %v178
    %267 = vmatprep.subr.bf16.mxu0 0
    %268 = vmatpush1.bf16.msra.mxu0 %v179
    %269 = vmatprep.subr.bf16.mxu0 0
    %270 = vmatpush1.bf16.msra.mxu0 %v180
    %271 = vmatprep.subr.bf16.mxu0 0
    %272 = vmatpush1.bf16.msra.mxu0 %v181
    %273 = vmatprep.subr.bf16.mxu0 0
    %274 = vmatpush1.bf16.msra.mxu0 0
    %275 = vmatprep.subr.bf16.mxu0 0
    %276 = vmatpush1.bf16.msra.mxu0 0
    %277 = vmatprep.subr.bf16.mxu0 0
    %278 = vmatpush1.bf16.msra.mxu0 0
    %279 = vmatprep.subr.bf16.mxu0 0
    %280 = vmatpush1.bf16.msra.mxu0 0
    %281 = vmatprep.subr.bf16.mxu0 0
    %282 = vmatpush1.bf16.msra.mxu0 0
    %283 = vmatprep.subr.bf16.mxu0 0
    %284 = vmatpush1.bf16.msra.mxu0 0
    %285 = vmatprep.subr.bf16.mxu0 0
    %286 = vmatpush1.bf16.msra.mxu0 0
    %287 = vmatprep.subr.bf16.mxu0 0
    %288 = vmatpush1.bf16.msra.mxu0 0
    %289 = vmatprep.subr.bf16.mxu0 0
    %290 = vmatpush1.bf16.msra.mxu0 0
    %291 = vmatprep.subr.bf16.mxu0 0
    %292 = vmatpush1.bf16.msra.mxu0 0
    %293 = vmatprep.subr.bf16.mxu0 0
    %294 = vmatpush1.bf16.msra.mxu0 0
    %295 = vmatprep.subr.bf16.mxu0 0
    %296 = vmatpush1.bf16.msra.mxu0 0
    %297 = vmatprep.mubr.bf16.mxu0 0
    %298 = vmatmul.mubr.bf16.gmra.mrb[0].mxu0 %v254
    %v299 = vpop.f32.mrb[0].mxu0
    %v300 = vadd.f32 %v202, %v299
    %v301 = vpop.f32.mrb[0].mxu0
    %v302 = vpop.f32.mrb[0].mxu0
    %v303 = vadd.f32 %v206, %v302
    %v304 = vpop.f32.mrb[0].mxu0
    %305 = vmatprep.mubr.bf16.mxu0 0
    %306 = vmatmul.mubr.bf16.gmra.mrb[0].mxu0 %v257
    %v307 = vpop.f32.mrb[0].mxu0
    %v308 = vadd.f32 %v210, %v307
    %v309 = vpop.f32.mrb[0].mxu0
    %v310 = vpop.f32.mrb[0].mxu0
    %v311 = vadd.f32 %v214, %v310
    %v312 = vpop.f32.mrb[0].mxu0
    %313 = vmatprep.mubr.bf16.mxu0 0
    %314 = vmatmul.mubr.bf16.gmra.mrb[0].mxu0 %v260
    %v315 = vpop.f32.mrb[0].mxu0
    %v316 = vadd.f32 %v218, %v315
    %v317 = vpop.f32.mrb[0].mxu0
    %v318 = vpop.f32.mrb[0].mxu0
    %v319 = vadd.f32 %v222, %v318
    %v320 = vpop.f32.mrb[0].mxu0
    %321 = vmatprep.mubr.bf16.mxu0 0
    %322 = vmatmul.mubr.bf16.gmra.mrb[0].mxu0 %v263
    %v323 = vpop.f32.mrb[0].mxu0
    %v324 = vadd.f32 %v226, %v323
    %v325 = vpop.f32.mrb[0].mxu0
    %v326 = vpop.f32.mrb[0].mxu0
    %v327 = vadd.f32 %v230, %v326
    %v328 = vpop.f32.mrb[0].mxu0
    %329 = vdwg.mxu0
    %v330 = vmax.f32 %v300, 0.0
    %v331 = vmax.f32 %v303, 0.0
    %v332 = vmax.f32 %v308, 0.0
    %v333 = vmax.f32 %v311, 0.0
    %v334 = vmax.f32 %v316, 0.0
    %v335 = vmax.f32 %v319, 0.0
    %v336 = vmax.f32 %v324, 0.0
    %v337 = vmax.f32 %v327, 0.0
    %v338 = vpack.c.bf16 %v331, %v330
    %v339 = vpack.c.bf16 %v333, %v332
    %v340 = vpack.c.bf16 %v335, %v334
    %v341 = vpack.c.bf16 %v337, %v336
    %342 = vset.pattern.permute.xlu0 4
    %343 = vperm.xlu0 %342, %v17
    %v344 = vpop.permute.xlu0 %343
    %346 = vset.pattern.permute.xlu0 4
    %347 = vperm.xlu0 %346, %v18
    %v348 = vpop.permute.xlu0 %347
    %350 = vset.pattern.permute.xlu0 4
    %351 = vperm.xlu0 %350, %v19
    %v352 = vpop.permute.xlu0 %351
    %354 = vset.pattern.permute.xlu0 4
    %355 = vperm.xlu0 %354, %v20
    %v356 = vpop.permute.xlu0 %355
    %358 = vset.pattern.permute.xlu0 4
    %359 = vperm.xlu0 %358, %v21
    %v360 = vpop.permute.xlu0 %359
    %362 = vset.pattern.permute.xlu0 4
    %363 = vperm.xlu0 %362, %v22
    %v364 = vpop.permute.xlu0 %363
    %366 = vset.pattern.permute.xlu0 4
    %367 = vperm.xlu0 %366, %v23
    %v368 = vpop.permute.xlu0 %367
    %370 = vset.pattern.permute.xlu0 4
    %371 = vperm.xlu0 %370, %v24
    %v372 = vpop.permute.xlu0 %371
    %v382 = vunpack.c.l.b16 %v190
    %v383 = vunpack.c.l.b16 %v191
    %v384 = vunpack.c.l.b16 %v192
    %v385 = vunpack.c.l.b16 %v193
    %v386 = vunpack.c.l.b16 %v194
    %v387 = vunpack.c.l.b16 %v195
    %v388 = vunpack.c.l.b16 %v196
    %v389 = vunpack.c.l.b16 %v197
    %v390 = vpack.c.b16 %v383, %v382
    %v391 = vpack.c.b16 %v385, %v384
    %v392 = vpack.c.b16 %v387, %v386
    %v393 = vpack.c.b16 %v389, %v388
    %v395 = vsel %vm252, %v390, 0
    %v398 = vsel %vm252, %v391, 0
    %v401 = vsel %vm252, %v392, 0
    %v404 = vsel %vm252, %v393, 0
    %406 = vmatprep.subr.bf16.mxu0 0
    %407 = vmatpush1.bf16.msra.mxu0 %v338
    %408 = vmatprep.subr.bf16.mxu0 0
    %409 = vmatpush1.bf16.msra.mxu0 %v339
    %410 = vmatprep.subr.bf16.mxu0 0
    %411 = vmatpush1.bf16.msra.mxu0 %v340
    %412 = vmatprep.subr.bf16.mxu0 0
    %413 = vmatpush1.bf16.msra.mxu0 %v341
    %414 = vmatprep.subr.bf16.mxu0 0
    %415 = vmatpush1.bf16.msra.mxu0 0
    %416 = vmatprep.subr.bf16.mxu0 0
    %417 = vmatpush1.bf16.msra.mxu0 0
    %418 = vmatprep.subr.bf16.mxu0 0
    %419 = vmatpush1.bf16.msra.mxu0 0
    %420 = vmatprep.subr.bf16.mxu0 0
    %421 = vmatpush1.bf16.msra.mxu0 0
    %422 = vmatprep.subr.bf16.mxu0 0
    %423 = vmatpush1.bf16.msra.mxu0 0
    %424 = vmatprep.subr.bf16.mxu0 0
    %425 = vmatpush1.bf16.msra.mxu0 0
    %426 = vmatprep.subr.bf16.mxu0 0
    %427 = vmatpush1.bf16.msra.mxu0 0
    %428 = vmatprep.subr.bf16.mxu0 0
    %429 = vmatpush1.bf16.msra.mxu0 0
    %430 = vmatprep.subr.bf16.mxu0 0
    %431 = vmatpush1.bf16.msra.mxu0 0
    %432 = vmatprep.subr.bf16.mxu0 0
    %433 = vmatpush1.bf16.msra.mxu0 0
    %434 = vmatprep.subr.bf16.mxu0 0
    %435 = vmatpush1.bf16.msra.mxu0 0
    %436 = vmatprep.subr.bf16.mxu0 0
    %437 = vmatpush1.bf16.msra.mxu0 0
    %438 = vmatprep.mubr.bf16.mxu0 0
    %439 = vmatmul.mubr.bf16.gmra.mrb[0].mxu0 %v395
    %v440 = vpop.f32.mrb[0].mxu0
    %v441 = vadd.f32 %v344, %v440
    %v442 = vpop.f32.mrb[0].mxu0
    %v443 = vpop.f32.mrb[0].mxu0
    %v444 = vadd.f32 %v348, %v443
    %v445 = vpop.f32.mrb[0].mxu0
    %446 = vmatprep.mubr.bf16.mxu0 0
    %447 = vmatmul.mubr.bf16.gmra.mrb[0].mxu0 %v398
    %v448 = vpop.f32.mrb[0].mxu0
    %v449 = vadd.f32 %v352, %v448
    %v450 = vpop.f32.mrb[0].mxu0
    %v451 = vpop.f32.mrb[0].mxu0
    %v452 = vadd.f32 %v356, %v451
    %v453 = vpop.f32.mrb[0].mxu0
    %454 = vmatprep.mubr.bf16.mxu0 0
    %455 = vmatmul.mubr.bf16.gmra.mrb[0].mxu0 %v401
    %v456 = vpop.f32.mrb[0].mxu0
    %v457 = vadd.f32 %v360, %v456
    %v458 = vpop.f32.mrb[0].mxu0
    %v459 = vpop.f32.mrb[0].mxu0
    %v460 = vadd.f32 %v364, %v459
    %v461 = vpop.f32.mrb[0].mxu0
    %462 = vmatprep.mubr.bf16.mxu0 0
    %463 = vmatmul.mubr.bf16.gmra.mrb[0].mxu0 %v404
    %v464 = vpop.f32.mrb[0].mxu0
    %v465 = vadd.f32 %v368, %v464
    %v466 = vpop.f32.mrb[0].mxu0
    %v467 = vpop.f32.mrb[0].mxu0
    %v468 = vadd.f32 %v372, %v467
    %v469 = vpop.f32.mrb[0].mxu0
    %470 = vdwg.mxu0
    %v471 = vmax.f32 %v441, 0.0
    %v472 = vmax.f32 %v444, 0.0
    %v473 = vmax.f32 %v449, 0.0
    %v474 = vmax.f32 %v452, 0.0
    %v475 = vmax.f32 %v457, 0.0
    %v476 = vmax.f32 %v460, 0.0
    %v477 = vmax.f32 %v465, 0.0
    %v478 = vmax.f32 %v468, 0.0
    %v479 = vpack.c.bf16 %v472, %v471
    %v480 = vpack.c.bf16 %v474, %v473
    %v481 = vpack.c.bf16 %v476, %v475
    %v482 = vpack.c.bf16 %v478, %v477
    %483 = vset.pattern.permute.xlu0 5
    %484 = vperm.xlu0 %483, %v17
    %v485 = vpop.permute.xlu0 %484
    %487 = vset.pattern.permute.xlu0 5
    %488 = vperm.xlu0 %487, %v18
    %v489 = vpop.permute.xlu0 %488
    %v493 = vunpack.c.l.b16 %v198
    %v494 = vunpack.c.l.b16 %v199
    %v495 = vpack.c.b16 %v494, %v493
    %v497 = vsel %vm252, %v495, 0
    %499 = vmatprep.subr.bf16.mxu0 0
    %500 = vmatpush1.bf16.msra.mxu0 %v479
    %501 = vmatprep.subr.bf16.mxu0 0
    %502 = vmatpush1.bf16.msra.mxu0 %v480
    %503 = vmatprep.subr.bf16.mxu0 0
    %504 = vmatpush1.bf16.msra.mxu0 %v481
    %505 = vmatprep.subr.bf16.mxu0 0
    %506 = vmatpush1.bf16.msra.mxu0 %v482
    %507 = vmatprep.subr.bf16.mxu0 0
    %508 = vmatpush1.bf16.msra.mxu0 0
    %509 = vmatprep.subr.bf16.mxu0 0
    %510 = vmatpush1.bf16.msra.mxu0 0
    %511 = vmatprep.subr.bf16.mxu0 0
    %512 = vmatpush1.bf16.msra.mxu0 0
    %513 = vmatprep.subr.bf16.mxu0 0
    %514 = vmatpush1.bf16.msra.mxu0 0
    %515 = vmatprep.subr.bf16.mxu0 0
    %516 = vmatpush1.bf16.msra.mxu0 0
    %517 = vmatprep.subr.bf16.mxu0 0
    %518 = vmatpush1.bf16.msra.mxu0 0
    %519 = vmatprep.subr.bf16.mxu0 0
    %520 = vmatpush1.bf16.msra.mxu0 0
    %521 = vmatprep.subr.bf16.mxu0 0
    %522 = vmatpush1.bf16.msra.mxu0 0
    %523 = vmatprep.subr.bf16.mxu0 0
    %524 = vmatpush1.bf16.msra.mxu0 0
    %525 = vmatprep.subr.bf16.mxu0 0
    %526 = vmatpush1.bf16.msra.mxu0 0
    %527 = vmatprep.subr.bf16.mxu0 0
    %528 = vmatpush1.bf16.msra.mxu0 0
    %529 = vmatprep.subr.bf16.mxu0 0
    %530 = vmatpush1.bf16.msra.mxu0 0
    %531 = vmatprep.mubr.bf16.mxu0 0
    %532 = vmatmul.mubr.bf16.gmra.mrb[0].mxu0 %v497
    %v533 = vpop.f32.mrb[0].mxu0
    %v534 = vadd.f32 %v485, %v533
    %v535 = vpop.f32.mrb[0].mxu0
    %v536 = vpop.f32.mrb[0].mxu0
    %v537 = vadd.f32 %v489, %v536
    %v538 = vpop.f32.mrb[0].mxu0
    %539 = vdwg.mxu0
    %v540 = vmax.f32 %v534, 0.0
    %v541 = vmax.f32 %v537, 0.0
    %542 = vset.pattern.permute.xlu0 6
    %543 = vperm.xlu0 %542, %v17
    %v544 = vpop.permute.xlu0 %543
    %546 = vset.pattern.permute.xlu0 6
    %547 = vperm.xlu0 %546, %v18
    %v548 = vpop.permute.xlu0 %547
    %v550 = vmul.f32 %v544, %v540
    %v551 = vmul.f32 %v548, %v541
    %v552 = vadd.f32 %v550, %v551
    %v553 = vrot.slane %v552, 4
    %v554 = vadd.f32 %v552, %v553
    %v555 = vrot.slane %v554, 2
    %v556 = vadd.f32 %v554, %v555
    %v557 = vrot.slane %v556, 1
    %v558 = vadd.f32 %v556, %v557
    %560 = vset.pattern.permute.xlu0 7
    %561 = vperm.xlu0 %560, %v25
    %v562 = vpop.permute.xlu0 %561
    %v564 = vadd.f32 %v558, %v562
    %vm565 = vcmp.ge.f32.partialorder %v564, 0.0
    %v566 = vmul.f32 %v564, 0.01
    %v567 = vsel %vm565, %v564, %v566
    %568 = vst [vmem:[#allocation2] sm:$0x1] %v567
    // Predicated region
    $region14: #{tpu_custom_call.1} parent=1 // pred_check
      _
    $region15: #{tpu_custom_call.1} parent=1 // pred_check_branch
      %570 = sbr.rel (0) target = $region17
    $region16: #{tpu_custom_call.1} parent=1 // pred_region
      %s572 = ssub.s32 16, 16
      %573 = vsyncadd [#allocation3], %s572
      %s575 = sshll.u32 [#allocation2], 4
      %s576 = int_to_ptr.vmem [resolvable:$true] %s575
      %578 = dma.vmem_to_hbm [thread:$0]  %s576, 16, %s3, [#allocation3]
    $region17: #{tpu_custom_call.1} parent=1 // pred_fallthru
      _
    // Predicated region
    $region18: #{tpu_custom_call.1} parent=1 // pred_check
      _
    $region19: #{tpu_custom_call.1} parent=1 // pred_check_branch
      %580 = sbr.rel (0) target = $region21
    $region20: #{tpu_custom_call.1} parent=1 // pred_region
      %581 = dma.done [#allocation3], 16
    $region21: #{tpu_custom_call.1} parent=1 // pred_fallthru
      _
    %582 = vsyncpa [#allocation3], 1

</llo_original>
